<compile_context>
chip_gen: v5e
topology: v5e:2x2
jax: 0.10.0
libtpu: 0.0.40
codegen_flags: <defaults>
</compile_context>

<pallas_src>
import functools

import jax
import jax.numpy as jnp
from jax import lax
from jax.experimental import pallas as pl
from jax.experimental.pallas import tpu as pltpu


def _round_up(x, m):
    return ((x + m - 1) // m) * m


def _align_lane(d):
    # v6e/v7x MXU tiles are 256x256: pad contraction/lane dims to 256 once the
    # real dim is >= 256.  Below that (and on v5e's 128x128 MXU) 128 is best.
    return _round_up(d, 256) if d >= 256 else _round_up(d, 128)


def _pick_h_chunk(H_p, h_chunk):
    # Largest multiple of 128 that is <= h_chunk and divides H_p
    # (H_p is always a multiple of 128, so this terminates at 128).
    c = max(128, (min(h_chunk, H_p) // 128) * 128)
    while H_p % c:
        c -= 128
    return c


def mlp_kernel(x_ref, w1_ref, b1_ref, w2_ref, b2_ref, o_ref, *, h_chunk):
    """o_tile = relu(x_tile @ w1 + b1) @ w2 + b2 for one batch tile.

    The hidden dim is processed in h_chunk-wide slices so the f32 intermediate
    stays vreg-sized instead of materializing a (tm, H) f32 buffer in VMEM.
    """
    # Cast x on the VPU right before the MXU feed (hides under MXU slack).
    x = x_ref[...].astype(w1_ref.dtype)
    H_p = w1_ref.shape[1]
    n_chunks = H_p // h_chunk

    def one_chunk(hk, acc):
        h = jnp.dot(x, w1_ref[:, pl.ds(hk, h_chunk)],
                    preferred_element_type=jnp.float32)
        h = jnp.maximum(h + b1_ref[:, pl.ds(hk, h_chunk)], 0.0)
        return acc + jnp.dot(h.astype(w2_ref.dtype),
                             w2_ref[pl.ds(hk, h_chunk), :],
                             preferred_element_type=jnp.float32)

    acc = jnp.zeros((x_ref.shape[0], o_ref.shape[1]), jnp.float32)
    if n_chunks == 1:
        acc = one_chunk(0, acc)
    else:
        def body(k, acc):
            hk = pl.multiple_of(k * h_chunk, h_chunk)
            return one_chunk(hk, acc)
        acc = lax.fori_loop(0, n_chunks, body, acc, unroll=n_chunks <= 8)

    o_ref[...] = (acc + b2_ref[...]).astype(o_ref.dtype)


def prepare_mlp_params(w1, b1, w2, b2, *, matmul_dtype=jnp.bfloat16):
    """Pad weights to MXU-friendly shapes and cast to the matmul dtype.

    Do this ONCE outside the hot path when the weights are reused across calls.
    Zero padding is semantics-preserving: padded hidden units get zero weights
    and zero bias -> relu(0) = 0 -> multiplied by zero rows of w2; padded output
    columns are sliced off by the caller.
    """
    In, H = w1.shape
    Out = w2.shape[1]
    In_p, H_p, Out_p = _align_lane(In), _align_lane(H), _align_lane(Out)
    w1p = jnp.pad(w1, ((0, In_p - In), (0, H_p - H))).astype(matmul_dtype)
    b1p = jnp.pad(b1.reshape(1, -1), ((0, 0), (0, H_p - H))).astype(jnp.float32)
    w2p = jnp.pad(w2, ((0, H_p - H), (0, Out_p - Out))).astype(matmul_dtype)
    b2p = jnp.pad(b2.reshape(1, -1), ((0, 0), (0, Out_p - Out))).astype(jnp.float32)
    return w1p, b1p, w2p, b2p


def mlp_forward(x, w1, b1, w2, b2, *, block_m=512, h_chunk=512,
                matmul_dtype=jnp.bfloat16):
    """out = relu(x @ w1 + b1) @ w2 + b2

    x : [B, In]   w1 : [In, H]   b1 : [1, H]   w2 : [H, Out]   b2 : [1, Out]
    (weights already transposed to [in_features, out_features]).
    """
    B, In = x.shape
    Out = w2.shape[1]
    out_dtype = x.dtype

    w1p, b1p, w2p, b2p = prepare_mlp_params(
        w1, b1, w2, b2, matmul_dtype=matmul_dtype)
    In_p, H_p = w1p.shape
    Out_p = w2p.shape[1]
    h_chunk = _pick_h_chunk(H_p, h_chunk)

    # Batch tile: multiple of 16 sublanes.  Ensure >= 2 grid steps when the
    # batch is big enough to split, so ("parallel",) shards across the two
    # TensorCores on v7x (neutral on v5e/v6e).
    tm = min(block_m, _round_up(B, 16))
    if B > 16 and pl.cdiv(B, tm) < 2:
        tm = _round_up(pl.cdiv(B, 2), 16)
    B_p = _round_up(B, tm)
    grid = (B_p // tm,)

    # x stays in its original dtype in HBM (bf16 cast happens in-kernel); only
    # pad when the shape actually needs alignment.
    if (B_p, In_p) != (B, In):
        xp = jnp.pad(x, ((0, B_p - B), (0, In_p - In)))
    else:
        xp = x

    w_item = jnp.dtype(matmul_dtype).itemsize
    x_item = jnp.dtype(x.dtype).itemsize
    o_item = jnp.dtype(out_dtype).itemsize

    # Real VMEM footprint: double-buffered x/out tiles, single-buffered
    # resident weights/biases, plus live f32 chunk + accumulator + bf16 x copy.
    vmem_needed = (
        2 * tm * In_p * x_item                    # x tile (Buffered(2))
        + 2 * tm * Out_p * o_item                 # out tile (Buffered(2))
        + (In_p * H_p + H_p * Out_p) * w_item     # weights (Buffered(1))
        + (H_p + Out_p) * 4                       # biases
        + tm * (h_chunk + Out_p) * 4              # live h chunk + f32 acc
        + tm * In_p * w_item                      # in-kernel bf16 copy of x
    )
    vmem_limit = int(min(max(int(vmem_needed * 1.5), 32 << 20), 100 << 20))

    flops = 2 * B_p * (In_p * H_p + H_p * Out_p)
    bytes_accessed = (xp.size * x_item
                      + (w1p.size + w2p.size) * w_item
                      + (b1p.size + b2p.size) * 4
                      + B_p * Out_p * o_item)

    kernel = functools.partial(mlp_kernel, h_chunk=h_chunk)
    resident = dict(pipeline_mode=pl.Buffered(1))   # grid-invariant operands

    out_padded = pl.pallas_call(
        kernel,
        out_shape=jax.ShapeDtypeStruct((B_p, Out_p), out_dtype),
        grid_spec=pltpu.PrefetchScalarGridSpec(
            num_scalar_prefetch=0,
            grid=grid,
            in_specs=[
                pl.BlockSpec((tm, In_p), lambda i: (i, 0)),             # x tile, pipelined
                pl.BlockSpec((In_p, H_p), lambda i: (0, 0), **resident),  # w1
                pl.BlockSpec((1, H_p), lambda i: (0, 0), **resident),     # b1
                pl.BlockSpec((H_p, Out_p), lambda i: (0, 0), **resident), # w2
                pl.BlockSpec((1, Out_p), lambda i: (0, 0), **resident),   # b2
            ],
            out_specs=pl.BlockSpec((tm, Out_p), lambda i: (i, 0)),
        ),
        compiler_params=pltpu.CompilerParams(
            dimension_semantics=("parallel",),
            vmem_limit_bytes=vmem_limit),
        cost_estimate=pl.CostEstimate(
            flops=flops, transcendentals=0, bytes_accessed=bytes_accessed),
    )(xp, w1p, b1p, w2p, b2p)

    return out_padded[:B, :Out]


def init_linear_params(key, in_features, out_features, dtype=jnp.float32):
    """Mimic torch.nn.Linear default init: U(-1/sqrt(fan_in), 1/sqrt(fan_in)).
    Returns weight already transposed to [in_features, out_features]."""
    k_w, k_b = jax.random.split(key)
    bound = 1.0 / jnp.sqrt(jnp.array(in_features, dtype))
    w = jax.random.uniform(k_w, (in_features, out_features), dtype,
                           minval=-bound, maxval=bound)
    b = jax.random.uniform(k_b, (1, out_features), dtype,
                           minval=-bound, maxval=bound)
    return w, b


def _run_case(key, batch, input_size, hidden_size, output_size):
    k_x, k_fc1, k_fc2 = jax.random.split(key, 3)
    x = jax.random.normal(k_x, (batch, input_size), jnp.float32)
    w1, b1 = init_linear_params(k_fc1, input_size, hidden_size)
    w2, b2 = init_linear_params(k_fc2, hidden_size, output_size)

    out = jax.block_until_ready(mlp_forward(x, w1, b1, w2, b2))
    assert out.shape == (batch, output_size)

    # Reference with matching bf16 matmul operands + f32 accumulation.
    def ref_bf16(x, w1, b1, w2, b2):
        h = jnp.dot(x.astype(jnp.bfloat16), w1.astype(jnp.bfloat16),
                    preferred_element_type=jnp.float32) + b1
        h = jnp.maximum(h, 0.0)
        y = jnp.dot(h.astype(jnp.bfloat16), w2.astype(jnp.bfloat16),
                    preferred_element_type=jnp.float32) + b2
        return y.astype(x.dtype)

    ref = ref_bf16(x, w1, b1, w2, b2)
    ref_f32 = jnp.maximum(x @ w1 + b1, 0.0) @ w2 + b2

    assert jnp.allclose(out, ref, atol=1e-2, rtol=1e-2), \
        float(jnp.max(jnp.abs(out - ref)))
    # Loose check against pure-f32 math (bf16 quantization of operands).
    assert jnp.allclose(out, ref_f32, atol=1e-1, rtol=1e-1), \
        float(jnp.max(jnp.abs(out - ref_f32)))


if __name__ == "__main__":
    key = jax.random.PRNGKey(0)
    k1, k2 = jax.random.split(key)

    # Small shapes consistent with the module's forward.
    _run_case(k1, batch=8, input_size=32, hidden_size=64, output_size=16)
    # Slightly larger case exercising the multi-step grid, batch/lane padding
    # and the chunked hidden-dimension loop.
    _run_case(k2, batch=40, input_size=48, hidden_size=700, output_size=24)

    print("KERNEL_OK")
</pallas_src>

<mosaic_0001>
module attributes {stable_mosaic.version = 11 : i64} {
  func.func @mlp_kernel(%arg0: i32, %arg1: memref<16x128xf32, #tpu.memory_space<vmem>>, %arg2: memref<128x128xbf16, #tpu.memory_space<vmem>>, %arg3: memref<1x128xf32, #tpu.memory_space<vmem>>, %arg4: memref<128x128xbf16, #tpu.memory_space<vmem>>, %arg5: memref<1x128xf32, #tpu.memory_space<vmem>>, %arg6: memref<16x128xf32, #tpu.memory_space<vmem>>) attributes {dimension_semantics = [#tpu.dimension_semantics<parallel>], iteration_bounds = array<i64: 1>, scalar_prefetch = 0 : i64, scratch_operands = 0 : i64, tpu.core_type = #tpu.core_type<tc>, window_params = [{transform_indices = @transform_0, window_bounds = array<i64: 16, 128>}, {pipeline_mode = #tpu.pipeline_mode<synchronous>, transform_indices = @transform_1, window_bounds = array<i64: 128, 128>}, {pipeline_mode = #tpu.pipeline_mode<synchronous>, transform_indices = @transform_2, window_bounds = array<i64: 1, 128>}, {pipeline_mode = #tpu.pipeline_mode<synchronous>, transform_indices = @transform_3, window_bounds = array<i64: 128, 128>}, {pipeline_mode = #tpu.pipeline_mode<synchronous>, transform_indices = @transform_4, window_bounds = array<i64: 1, 128>}, {transform_indices = @transform_5, window_bounds = array<i64: 16, 128>}]} {
    %c0 = arith.constant 0 : index
    %c0_0 = arith.constant 0 : index
    %0 = vector.load %arg1[%c0, %c0_0] : memref<16x128xf32, #tpu.memory_space<vmem>>, vector<16x128xf32>
    %1 = arith.truncf %0 : vector<16x128xf32> to vector<16x128xbf16>
    %cst = arith.constant 0.000000e+00 : f32
    %2 = vector.broadcast %cst : f32 to vector<16x128xf32>
    %c0_1 = arith.constant 0 : index
    %c0_2 = arith.constant 0 : index
    %3 = vector.load %arg2[%c0_1, %c0_2] : memref<128x128xbf16, #tpu.memory_space<vmem>>, vector<128x128xbf16>
    %cst_3 = arith.constant dense<0.000000e+00> : vector<16x128xf32>
    %4 = tpu.matmul %1, %3, %cst_3 {dimension_numbers = #tpu.dot_dimension_numbers<[1], [0], [0], [1], [0, 0, 1, 1], [], []>} : vector<16x128xbf16>, vector<128x128xbf16>, vector<16x128xf32> -> vector<16x128xf32>
    %c0_4 = arith.constant 0 : index
    %c0_5 = arith.constant 0 : index
    %5 = vector.load %arg3[%c0_4, %c0_5] : memref<1x128xf32, #tpu.memory_space<vmem>>, vector<1x128xf32>
    %6 = vector.broadcast %5 : vector<1x128xf32> to vector<16x128xf32>
    %7 = arith.addf %4, %6 : vector<16x128xf32>
    %cst_6 = arith.constant 0.000000e+00 : f32
    %8 = vector.broadcast %cst_6 : f32 to vector<16x128xf32>
    %9 = arith.maximumf %7, %8 : vector<16x128xf32>
    %10 = arith.truncf %9 : vector<16x128xf32> to vector<16x128xbf16>
    %c0_7 = arith.constant 0 : index
    %c0_8 = arith.constant 0 : index
    %11 = vector.load %arg4[%c0_7, %c0_8] : memref<128x128xbf16, #tpu.memory_space<vmem>>, vector<128x128xbf16>
    %cst_9 = arith.constant dense<0.000000e+00> : vector<16x128xf32>
    %12 = tpu.matmul %10, %11, %cst_9 {dimension_numbers = #tpu.dot_dimension_numbers<[1], [0], [0], [1], [0, 0, 1, 1], [], []>} : vector<16x128xbf16>, vector<128x128xbf16>, vector<16x128xf32> -> vector<16x128xf32>
    %13 = arith.addf %2, %12 : vector<16x128xf32>
    %c0_10 = arith.constant 0 : index
    %c0_11 = arith.constant 0 : index
    %14 = vector.load %arg5[%c0_10, %c0_11] : memref<1x128xf32, #tpu.memory_space<vmem>>, vector<1x128xf32>
    %15 = vector.broadcast %14 : vector<1x128xf32> to vector<16x128xf32>
    %16 = arith.addf %13, %15 : vector<16x128xf32>
    %c0_12 = arith.constant 0 : index
    %c0_13 = arith.constant 0 : index
    %17 = vector.load %arg6[%c0_12, %c0_13] : memref<16x128xf32, #tpu.memory_space<vmem>>, vector<16x128xf32>
    tpu.vector_store %arg6[%c0_12, %c0_13], %16 {strides = array<i32>} : memref<16x128xf32, #tpu.memory_space<vmem>>, vector<16x128xf32>,
    return
  }
  func.func @transform_0(%arg0: i32) -> (i32, i32) {
    %c0_i32 = arith.constant 0 : i32
    %c0_i32_0 = arith.constant 0 : i32
    return %arg0, %c0_i32 : i32, i32
  }
  func.func @transform_1(%arg0: i32) -> (i32, i32) {
    %c0_i32 = arith.constant 0 : i32
    %c0_i32_0 = arith.constant 0 : i32
    %c0_i32_1 = arith.constant 0 : i32
    return %c0_i32, %c0_i32_0 : i32, i32
  }
  func.func @transform_2(%arg0: i32) -> (i32, i32) {
    %c0_i32 = arith.constant 0 : i32
    %c0_i32_0 = arith.constant 0 : i32
    %c0_i32_1 = arith.constant 0 : i32
    return %c0_i32, %c0_i32_0 : i32, i32
  }
  func.func @transform_3(%arg0: i32) -> (i32, i32) {
    %c0_i32 = arith.constant 0 : i32
    %c0_i32_0 = arith.constant 0 : i32
    %c0_i32_1 = arith.constant 0 : i32
    return %c0_i32, %c0_i32_0 : i32, i32
  }
  func.func @transform_4(%arg0: i32) -> (i32, i32) {
    %c0_i32 = arith.constant 0 : i32
    %c0_i32_0 = arith.constant 0 : i32
    %c0_i32_1 = arith.constant 0 : i32
    return %c0_i32, %c0_i32_0 : i32, i32
  }
  func.func @transform_5(%arg0: i32) -> (i32, i32) {
    %c0_i32 = arith.constant 0 : i32
    %c0_i32_0 = arith.constant 0 : i32
    return %arg0, %c0_i32 : i32, i32
  }
}

</mosaic_0001>

<llo_original>
// kernel: tpu_custom_call.1
$region0: #{tpu_custom_call.1}
  #allocation0 [shape = 'u32[]', space=smem, size = 0x4, offset = 0x4, fixed_abs, tag = 'smem constant byte address 0x4 - core index']
  #allocation1 [shape = 'u32[72,128]{1,0:T(1,128)}', space=vmem, size = 0x9000, scoped, tag = 'internal scratch']
  %s0 = inlined_call_operand.hbm [shape: f32[16,128], index: 0, kind: input, shape index: {}]
  %s1 = inlined_call_operand.hbm [shape: bf16[128,128], index: 1, kind: input, shape index: {}]
  %s2 = inlined_call_operand.vmem [shape: f32[1,128], index: 2, kind: input, shape index: {}]
  %s3 = inlined_call_operand.hbm [shape: bf16[128,128], index: 3, kind: input, shape index: {}]
  %s4 = inlined_call_operand.vmem [shape: f32[1,128], index: 4, kind: input, shape index: {}]
  %s5 = inlined_call_operand.hbm [shape: f32[16,128], index: 5, kind: output, shape index: {}]
  %s6 = sld [smem:[#allocation0]]
  $region42: #{tpu_custom_call.1} parent=0
    _
  %s8 = ssub.s32 1, %s6
  %s9 = scalar_select 0, %s8, %s6
  $region1: #{tpu_custom_call.1} parent=0
    #allocation2 [shape = 'u8[8192]{0}', space=vmem, size = 0x2000, scoped, tag = 'input window, operand 0, single buffered']
    #allocation3 [shape = 's32[1]{0}', space=sflag, size = 0x4, scoped, tag = 'scoped memory for tpu_custom_call.1']
    #allocation4 [shape = 's32[1]{0}', space=sflag, size = 0x4, scoped, tag = 'scoped memory for tpu_custom_call.1']
    #allocation5 [shape = 'u8[32768]{0}', space=vmem, size = 0x8000, scoped, tag = 'input window, operand 1, single buffered']
    #allocation6 [shape = 's32[1]{0}', space=sflag, size = 0x4, scoped, tag = 'scoped memory for tpu_custom_call.1']
    #allocation7 [shape = 'u8[32768]{0}', space=vmem, size = 0x8000, scoped, tag = 'input window, operand 3, single buffered']
    #allocation8 [shape = 'u8[8192]{0}', space=vmem, size = 0x2000, scoped, tag = 'output window, operand 0, single buffered']
    %10 = vsyncpa [#allocation3], 0
    %11 = vsyncpa [#allocation6], 0
    %12 = vsyncpa [#allocation4], 0
    // Predicated region
    $region2: #{tpu_custom_call.1} parent=1 // pred_check
      _
    $region3: #{tpu_custom_call.1} parent=1 // pred_check_branch
      %14 = sbr.rel (0) target = $region5
    $region4: #{tpu_custom_call.1} parent=1 // pred_region
      %16 = vsyncadd [#allocation3], 0
      %s17 = sshll.u32 %s0, 4
      %s18 = int_to_ptr.hbm [resolvable:$true] %s17
      %s19 = sshll.u32 [#allocation2], 4
      %s20 = int_to_ptr.vmem [resolvable:$true] %s19
      %25 = dma.hbm_to_vmem [thread:$0]  %s18, 256, %s20, [#allocation3], 128, 128, 8
    $region5: #{tpu_custom_call.1} parent=1 // pred_fallthru
      _
    // Predicated region
    $region6: #{tpu_custom_call.1} parent=1 // pred_check
      _
    $region7: #{tpu_custom_call.1} parent=1 // pred_check_branch
      %27 = sbr.rel (0) target = $region9
    $region8: #{tpu_custom_call.1} parent=1 // pred_region
      %29 = vsyncadd [#allocation6], 0
      %s30 = sshll.u32 %s1, 4
      %s31 = int_to_ptr.hbm [resolvable:$true] %s30
      %s32 = sshll.u32 [#allocation5], 4
      %s33 = int_to_ptr.vmem [resolvable:$true] %s32
      %38 = dma.hbm_to_vmem [thread:$0]  %s31, 1024, %s33, [#allocation6], 64, 64, 4
    $region9: #{tpu_custom_call.1} parent=1 // pred_fallthru
      _
    // Predicated region
    $region10: #{tpu_custom_call.1} parent=1 // pred_check
      _
    $region11: #{tpu_custom_call.1} parent=1 // pred_check_branch
      %40 = sbr.rel (0) target = $region13
    $region12: #{tpu_custom_call.1} parent=1 // pred_region
      _
    $region13: #{tpu_custom_call.1} parent=1 // pred_fallthru
      _
    // Predicated region
    $region14: #{tpu_custom_call.1} parent=1 // pred_check
      _
    $region15: #{tpu_custom_call.1} parent=1 // pred_check_branch
      %42 = sbr.rel (0) target = $region17
    $region16: #{tpu_custom_call.1} parent=1 // pred_region
      %44 = vsyncadd [#allocation6], 0
      %s45 = sshll.u32 %s3, 4
      %s46 = int_to_ptr.hbm [resolvable:$true] %s45
      %s47 = sshll.u32 [#allocation7], 4
      %s48 = int_to_ptr.vmem [resolvable:$true] %s47
      %53 = dma.hbm_to_vmem [thread:$0]  %s46, 1024, %s48, [#allocation6], 64, 64, 4
    $region17: #{tpu_custom_call.1} parent=1 // pred_fallthru
      _
    // Predicated region
    $region18: #{tpu_custom_call.1} parent=1 // pred_check
      _
    $region19: #{tpu_custom_call.1} parent=1 // pred_check_branch
      %55 = sbr.rel (0) target = $region21
    $region20: #{tpu_custom_call.1} parent=1 // pred_region
      _
    $region21: #{tpu_custom_call.1} parent=1 // pred_fallthru
      _
    // Predicated region
    $region22: #{tpu_custom_call.1} parent=1 // pred_check
      _
    $region23: #{tpu_custom_call.1} parent=1 // pred_check_branch
      %57 = sbr.rel (0) target = $region25
    $region24: #{tpu_custom_call.1} parent=1 // pred_region
      %59 = dma.done [#allocation3], 256
    $region25: #{tpu_custom_call.1} parent=1 // pred_fallthru
      _
    // Predicated region
    $region26: #{tpu_custom_call.1} parent=1 // pred_check
      _
    $region27: #{tpu_custom_call.1} parent=1 // pred_check_branch
      %61 = sbr.rel (0) target = $region29
    $region28: #{tpu_custom_call.1} parent=1 // pred_region
      %63 = dma.done [#allocation6], 1024
    $region29: #{tpu_custom_call.1} parent=1 // pred_fallthru
      _
    // Predicated region
    $region30: #{tpu_custom_call.1} parent=1 // pred_check
      _
    $region31: #{tpu_custom_call.1} parent=1 // pred_check_branch
      %65 = sbr.rel (0) target = $region33
    $region32: #{tpu_custom_call.1} parent=1 // pred_region
      %67 = dma.done [#allocation6], 1024
    $region33: #{tpu_custom_call.1} parent=1 // pred_fallthru
      _
    %v68 = vld [vmem:[#allocation2] sm:$0xff]
    %v69 = vld [vmem:[#allocation2 + $0x8] sm:$0xff]
    %v70 = vpack.c.bf16 %v69, %v68
    %v71 = vld [vmem:[#allocation5] sm:$0xf]
    %v72 = vld [vmem:[#allocation5 + $0x4] sm:$0xf]
    %v73 = vld [vmem:[#allocation5 + $0x8] sm:$0xf]
    %v74 = vld [vmem:[#allocation5 + $0xc] sm:$0xf]
    %v75 = vld [vmem:[#allocation5 + $0x10] sm:$0xf]
    %v76 = vld [vmem:[#allocation5 + $0x14] sm:$0xf]
    %v77 = vld [vmem:[#allocation5 + $0x18] sm:$0xf]
    %v78 = vld [vmem:[#allocation5 + $0x1c] sm:$0xf]
    %v79 = vld [vmem:[#allocation5 + $0x20] sm:$0xf]
    %v80 = vld [vmem:[#allocation5 + $0x24] sm:$0xf]
    %v81 = vld [vmem:[#allocation5 + $0x28] sm:$0xf]
    %v82 = vld [vmem:[#allocation5 + $0x2c] sm:$0xf]
    %v83 = vld [vmem:[#allocation5 + $0x30] sm:$0xf]
    %v84 = vld [vmem:[#allocation5 + $0x34] sm:$0xf]
    %v85 = vld [vmem:[#allocation5 + $0x38] sm:$0xf]
    %v86 = vld [vmem:[#allocation5 + $0x3c] sm:$0xf]
    %v87 = vld [vmem:[%s2] sm:$0x1]
    %v89 = vperm.slane %v87, 0
    %v107 = vunpack.c.l.b16 %v71
    %v108 = vunpack.c.l.b16 %v72
    %v109 = vunpack.c.l.b16 %v73
    %v110 = vunpack.c.l.b16 %v74
    %v111 = vunpack.c.l.b16 %v75
    %v112 = vunpack.c.l.b16 %v76
    %v113 = vunpack.c.l.b16 %v77
    %v114 = vunpack.c.l.b16 %v78
    %v115 = vunpack.c.l.b16 %v79
    %v116 = vunpack.c.l.b16 %v80
    %v117 = vunpack.c.l.b16 %v81
    %v118 = vunpack.c.l.b16 %v82
    %v119 = vunpack.c.l.b16 %v83
    %v120 = vunpack.c.l.b16 %v84
    %v121 = vunpack.c.l.b16 %v85
    %v122 = vunpack.c.l.b16 %v86
    %v123 = vpack.c.b16 %v108, %v107
    %v124 = vpack.c.b16 %v110, %v109
    %v125 = vpack.c.b16 %v112, %v111
    %v126 = vpack.c.b16 %v114, %v113
    %v127 = vpack.c.b16 %v116, %v115
    %v128 = vpack.c.b16 %v118, %v117
    %v129 = vpack.c.b16 %v120, %v119
    %v130 = vpack.c.b16 %v122, %v121
    %139 = vmatpush.bf16.msra.mxu0 %v130
    %140 = vmatpush.bf16.msra.mxu0 %v129
    %141 = vmatpush.bf16.msra.mxu0 %v128
    %142 = vmatpush.bf16.msra.mxu0 %v127
    %143 = vmatpush.bf16.msra.mxu0 %v126
    %144 = vmatpush.bf16.msra.mxu0 %v125
    %145 = vmatpush.bf16.msra.mxu0 %v124
    %146 = vmatpush.bf16.msra.mxu0 %v123
    %147 = vmatmul.bf16.gmra.mxu0 %v70
    %v148 = vpop.f32.mrf.mxu0
    %v149 = vadd.f32 %v89, %v148
    %v150 = vpop.f32.mrf.mxu0
    %v151 = vadd.f32 %v89, %v150
    %152 = vdwg.mxu0
    %v153 = vmax.f32 %v149, 0.0
    %v154 = vmax.f32 %v151, 0.0
    %v155 = vpack.c.bf16 %v154, %v153
    %v156 = vld [vmem:[#allocation7] sm:$0xf]
    %v157 = vld [vmem:[#allocation7 + $0x4] sm:$0xf]
    %v158 = vld [vmem:[#allocation7 + $0x8] sm:$0xf]
    %v159 = vld [vmem:[#allocation7 + $0xc] sm:$0xf]
    %v160 = vld [vmem:[#allocation7 + $0x10] sm:$0xf]
    %v161 = vld [vmem:[#allocation7 + $0x14] sm:$0xf]
    %v162 = vld [vmem:[#allocation7 + $0x18] sm:$0xf]
    %v163 = vld [vmem:[#allocation7 + $0x1c] sm:$0xf]
    %v164 = vld [vmem:[#allocation7 + $0x20] sm:$0xf]
    %v165 = vld [vmem:[#allocation7 + $0x24] sm:$0xf]
    %v166 = vld [vmem:[#allocation7 + $0x28] sm:$0xf]
    %v167 = vld [vmem:[#allocation7 + $0x2c] sm:$0xf]
    %v168 = vld [vmem:[#allocation7 + $0x30] sm:$0xf]
    %v169 = vld [vmem:[#allocation7 + $0x34] sm:$0xf]
    %v170 = vld [vmem:[#allocation7 + $0x38] sm:$0xf]
    %v171 = vld [vmem:[#allocation7 + $0x3c] sm:$0xf]
    %v172 = vld [vmem:[%s4] sm:$0x1]
    %v174 = vperm.slane %v172, 0
    %v192 = vunpack.c.l.b16 %v156
    %v193 = vunpack.c.l.b16 %v157
    %v194 = vunpack.c.l.b16 %v158
    %v195 = vunpack.c.l.b16 %v159
    %v196 = vunpack.c.l.b16 %v160
    %v197 = vunpack.c.l.b16 %v161
    %v198 = vunpack.c.l.b16 %v162
    %v199 = vunpack.c.l.b16 %v163
    %v200 = vunpack.c.l.b16 %v164
    %v201 = vunpack.c.l.b16 %v165
    %v202 = vunpack.c.l.b16 %v166
    %v203 = vunpack.c.l.b16 %v167
    %v204 = vunpack.c.l.b16 %v168
    %v205 = vunpack.c.l.b16 %v169
    %v206 = vunpack.c.l.b16 %v170
    %v207 = vunpack.c.l.b16 %v171
    %v208 = vpack.c.b16 %v193, %v192
    %v209 = vpack.c.b16 %v195, %v194
    %v210 = vpack.c.b16 %v197, %v196
    %v211 = vpack.c.b16 %v199, %v198
    %v212 = vpack.c.b16 %v201, %v200
    %v213 = vpack.c.b16 %v203, %v202
    %v214 = vpack.c.b16 %v205, %v204
    %v215 = vpack.c.b16 %v207, %v206
    %224 = vmatpush.bf16.msra.mxu0 %v215
    %225 = vmatpush.bf16.msra.mxu0 %v214
    %226 = vmatpush.bf16.msra.mxu0 %v213
    %227 = vmatpush.bf16.msra.mxu0 %v212
    %228 = vmatpush.bf16.msra.mxu0 %v211
    %229 = vmatpush.bf16.msra.mxu0 %v210
    %230 = vmatpush.bf16.msra.mxu0 %v209
    %231 = vmatpush.bf16.msra.mxu0 %v208
    %232 = vmatmul.bf16.gmra.mxu0 %v155
    %v233 = vpop.f32.mrf.mxu0
    %v234 = vadd.f32 %v174, %v233
    %v235 = vpop.f32.mrf.mxu0
    %v236 = vadd.f32 %v174, %v235
    %237 = vdwg.mxu0
    %238 = vst [vmem:[#allocation8] sm:$0xff] %v234
    %239 = vst [vmem:[#allocation8 + $0x8] sm:$0xff] %v236
    // Predicated region
    $region34: #{tpu_custom_call.1} parent=1 // pred_check
      _
    $region35: #{tpu_custom_call.1} parent=1 // pred_check_branch
      %241 = sbr.rel (0) target = $region37
    $region36: #{tpu_custom_call.1} parent=1 // pred_region
      %243 = vsyncadd [#allocation4], 0
      %s244 = sshll.u32 [#allocation8], 4
      %s245 = int_to_ptr.vmem [resolvable:$true] %s244
      %s246 = sshll.u32 %s5, 4
      %s247 = int_to_ptr.hbm [resolvable:$true] %s246
      %252 = dma.vmem_to_hbm [thread:$0]  %s245, 256, %s247, [#allocation4], 128, 128, 8
    $region37: #{tpu_custom_call.1} parent=1 // pred_fallthru
      _
    // Predicated region
    $region38: #{tpu_custom_call.1} parent=1 // pred_check
      _
    $region39: #{tpu_custom_call.1} parent=1 // pred_check_branch
      %254 = sbr.rel (0) target = $region41
    $region40: #{tpu_custom_call.1} parent=1 // pred_region
      %256 = dma.done [#allocation4], 256
    $region41: #{tpu_custom_call.1} parent=1 // pred_fallthru
      _
    %257 = vsyncpa [#allocation3], 1
    %258 = vsyncpa [#allocation6], 1
    %259 = vsyncpa [#allocation4], 1

</llo_original>
